<compile_context>
chip_gen: v7x
topology: tpu7x:2x2x1
jax: 0.10.0
libtpu: 0.0.40
codegen_flags: <defaults>
</compile_context>

<pallas_src>
import functools

import jax
import jax.numpy as jnp
from jax import lax
from jax.experimental import pallas as pl
from jax.experimental.pallas import tpu as pltpu

_SQRT2_INV = 0.7071067811865476
_LN_EPS = 1e-5

_OUT_DIM = 5        # true output width of the final Linear(64, 5)
_OUT_PAD = 128      # lane-dense output width (sliced back to 5 outside)
_K_PAD = 8          # first matmul K: 4 zero-padded to 8
_W_COLS = 256       # weight/vector slab lane width
_TB_MAX = 512       # max batch tile (sweet spot on v5e/v6e, safe on v7x VMEM)

# After folding proj into the first hidden Linear the kernel is 5 hidden
# (Linear -> LayerNorm -> GELU) blocks plus the final Linear(64,5)+Sigmoid:
#   (true fan_in, slab fan_in rows, true fan_out, LayerNorm n)
_HID = [
    (4,   8,   256, 256),   # folded proj+Linear(256,256) -> LN(256)
    (256, 256, 256, 256),
    (256, 256, 128, 128),
    (128, 128, 64,  64),
    (64,  128, 64,  64),    # fan_in padded to 128 rows (zero) for dense K
]
_OW = [256, 256, 128, 128, 128]   # compute (lane) width per hidden block
_FIN = (64, 128, 5)               # final Linear: true fan_in, slab rows, true fan_out

_W_OFF = []
_o = 0
for _fi, _fir, _fo, _n in _HID:
    _W_OFF.append(_o)
    _o += _fir
_FIN_OFF = _o
_o += _FIN[1]
_W_ROWS = _o                      # 8 + 256 + 256 + 128 + 128 + 128 = 904
_V_ROWS = 3 * len(_HID) + 1       # (b, gamma, beta) x 5 + final bias = 16


def _round_up(v, m):
    return (v + m - 1) // m * m


def _layernorm(h, gamma, beta, n):
    # Single-pass LN: sum and sum-of-squares, then mu / var.  Padded lanes
    # (value 0, gamma=beta=0) stay exactly 0 after this.
    s = jnp.sum(h, axis=-1, keepdims=True)
    s2 = jnp.sum(h * h, axis=-1, keepdims=True)
    inv_n = 1.0 / n
    mu = s * inv_n
    var = s2 * inv_n - mu * mu
    return (h - mu) * lax.rsqrt(var + _LN_EPS) * gamma + beta


def _gelu_exact(h):
    # Matches torch.nn.GELU() default (erf-based).
    return 0.5 * h * (1.0 + lax.erf(h * _SQRT2_INV))


def _gelu_tanh(h):
    # EUP-friendly tanh approximation (diverges from erf GELU by up to ~1e-3).
    c = 0.7978845608028654  # sqrt(2/pi)
    return 0.5 * h * (1.0 + jnp.tanh(c * (h + 0.044715 * h * h * h)))


def mlp_kernel(x_ref, w_ref, v_ref, o_ref, *, approx_gelu=False):
    """x_ref: [tb, 8]; w_ref: [904, 256]; v_ref: [16, 256]; o_ref: [tb, 128]."""
    gelu = _gelu_tanh if approx_gelu else _gelu_exact
    h = x_ref[...].astype(jnp.float32)

    # 5 x (Linear -> LayerNorm -> GELU); 64-wide layers run lane-dense at 128.
    for blk, ((_fi, fir, _fo, n), ow) in enumerate(zip(_HID, _OW)):
        woff = _W_OFF[blk]
        w = w_ref[woff:woff + fir, :ow]
        vr = 3 * blk
        b = v_ref[vr:vr + 1, :ow]
        g = v_ref[vr + 1:vr + 2, :ow]
        be = v_ref[vr + 2:vr + 3, :ow]
        h = jnp.dot(h, w, preferred_element_type=jnp.float32) + b
        h = _layernorm(h, g, be, float(n))
        h = gelu(h)

    # Final Linear(64, 5) -> Sigmoid, lane-dense 128 output (cols 5..127 come
    # from zero weight/bias padding -> sigmoid(0)=0.5, sliced off outside).
    w6 = w_ref[_FIN_OFF:_FIN_OFF + _FIN[1], :_OUT_PAD]
    b6 = v_ref[_V_ROWS - 1:_V_ROWS, :_OUT_PAD]
    h = jnp.dot(h, w6, preferred_element_type=jnp.float32) + b6
    o_ref[...] = jax.nn.sigmoid(h).astype(o_ref.dtype)


def pack_params(params):
    """Fold proj into the first hidden Linear and pack into 2 VMEM slabs.

    w_slab [904, 256]: row-stacked weights, fan_in rounded up per _HID/_FIN,
                       columns zero-padded to 256.
    v_slab [16, 256]:  rows = (b, gamma, beta) x 5 hidden blocks, final bias.
                       Zero pads keep padded lanes exactly zero through LN/GELU.
    """
    # proj(4,256) has no nonlinearity before Linear(256,256): fold them.
    w01 = params[0] @ params[2]                  # [4, 256]
    b01 = params[1] @ params[2] + params[3]      # [1, 256]
    hidden = [
        (w01, b01, params[4], params[5]),
        (params[6], params[7], params[8], params[9]),
        (params[10], params[11], params[12], params[13]),
        (params[14], params[15], params[16], params[17]),
        (params[18], params[19], params[20], params[21]),
    ]
    w_final, b_final = params[22], params[23]

    w_rows, v_rows = [], []
    for (w, b, g, be), (fi, fir, fo, _n) in zip(hidden, _HID):
        w_rows.append(jnp.zeros((fir, _W_COLS), jnp.float32).at[:fi, :fo].set(w))
        for v in (b, g, be):
            v_rows.append(jnp.zeros((1, _W_COLS), jnp.float32).at[:, :fo].set(v))
    fi, fir, fo = _FIN
    w_rows.append(jnp.zeros((fir, _W_COLS), jnp.float32).at[:fi, :fo].set(w_final))
    v_rows.append(jnp.zeros((1, _W_COLS), jnp.float32).at[:, :fo].set(b_final))

    w_slab = jnp.concatenate(w_rows, axis=0)
    v_slab = jnp.concatenate(v_rows, axis=0)
    assert w_slab.shape == (_W_ROWS, _W_COLS), w_slab.shape
    assert v_slab.shape == (_V_ROWS, _W_COLS), v_slab.shape
    return w_slab, v_slab


def _choose_tile(B):
    """Balanced batch tiles: tb <= _TB_MAX, tb % 8 == 0, minimal padded rows.

    Forces nb >= 2 once B >= 128 so v7x's two TensorCores both get work on the
    "parallel" batch axis (no effect on v5e/v6e beyond smaller, balanced tiles).
    """
    nb = pl.cdiv(B, _TB_MAX)
    if nb < 2 and B >= 128:
        nb = 2
    tb = _round_up(pl.cdiv(B, nb), 8)
    nb = pl.cdiv(B, tb)
    return tb, nb


def mlp_forward(x, packed, *, approx_gelu=False):
    """x: [B, 4] float32 -> [B, 5] float32."""
    w_slab, v_slab = packed
    B, fin = x.shape
    assert fin == 4

    tb, nb = _choose_tile(B)
    b_pad = nb * tb

    # Pad batch rows and K (4 -> 8) with zeros.
    x_p = jnp.zeros((b_pad, _K_PAD), jnp.float32).at[:B, :fin].set(x)

    kernel = functools.partial(mlp_kernel, approx_gelu=approx_gelu)
    out = pl.pallas_call(
        kernel,
        out_shape=jax.ShapeDtypeStruct((b_pad, _OUT_PAD), jnp.float32),
        grid_spec=pltpu.PrefetchScalarGridSpec(
            num_scalar_prefetch=0,
            grid=(nb,),
            in_specs=[
                pl.BlockSpec((tb, _K_PAD), lambda i: (i, 0)),
                # Constant block index -> param slabs DMA'd once, not per step.
                pl.BlockSpec(w_slab.shape, lambda i: (0, 0)),
                pl.BlockSpec(v_slab.shape, lambda i: (0, 0)),
            ],
            out_specs=pl.BlockSpec((tb, _OUT_PAD), lambda i: (i, 0)),
        ),
        compiler_params=pltpu.CompilerParams(
            dimension_semantics=("parallel",),
            # Total footprint is only a few MiB; explicit 32 MiB covers v5e's
            # 16 MiB scoped default and stays well inside v7x's 64 MiB VMEM.
            vmem_limit_bytes=32 * 1024 * 1024,
        ),
    )(x_p, w_slab, v_slab)
    return out[:B, :_OUT_DIM]


# ----------------------------------------------------------------------------
# Reference / init (mirror the PyTorch module).
# ----------------------------------------------------------------------------

# (fan_in, fan_out) of the 7 Linear layers of MLP_oss_only.
_LIN_DIMS = [(4, 256), (256, 256), (256, 256), (256, 128),
             (128, 64), (64, 64), (64, 5)]


def init_params(key):
    """Deterministic PyTorch-style init.

    Order: proj(w,b), then for each of 5 hidden blocks (w, b, ln_gamma, ln_beta),
    then final (w, b).  Weights are [in, out]; vectors are [1, out].
    """
    keys = jax.random.split(key, 2 * len(_LIN_DIMS))
    params = []
    for li, (fan_in, fan_out) in enumerate(_LIN_DIMS):
        bound = fan_in ** -0.5
        w = jax.random.uniform(keys[2 * li], (fan_in, fan_out),
                               jnp.float32, -bound, bound)
        b = jax.random.uniform(keys[2 * li + 1], (1, fan_out),
                               jnp.float32, -bound, bound)
        params += [w, b]
        if 1 <= li <= 5:  # LayerNorm follows the hidden Linears
            params += [jnp.ones((1, fan_out), jnp.float32),
                       jnp.zeros((1, fan_out), jnp.float32)]
    return params


def ref_forward(x, params):
    """Pure-JAX reference mirroring the PyTorch module (unfused)."""
    h = x @ params[0] + params[1]
    idx = 2
    for _ in range(5):
        w, b, g, be = params[idx:idx + 4]
        h = h @ w + b
        mu = h.mean(-1, keepdims=True)
        var = ((h - mu) ** 2).mean(-1, keepdims=True)
        h = (h - mu) / jnp.sqrt(var + _LN_EPS) * g + be
        h = jax.nn.gelu(h, approximate=False)
        idx += 4
    h = h @ params[idx] + params[idx + 1]
    return jax.nn.sigmoid(h)


if __name__ == "__main__":
    key = jax.random.PRNGKey(0)
    pkey, xkey = jax.random.split(key)

    params = init_params(pkey)
    packed = pack_params(params)

    # Small single-tile case.
    B = 8
    x = jax.random.normal(xkey, (B, 4), dtype=jnp.float32)
    out = jax.block_until_ready(mlp_forward(x, packed))
    ref = jax.block_until_ready(ref_forward(x, params))
    assert out.shape == (B, _OUT_DIM), out.shape
    max_err = float(jnp.max(jnp.abs(out - ref)))
    assert jnp.allclose(out, ref, atol=1e-4, rtol=1e-4), f"max abs err {max_err}"

    # Multi-tile case (nb >= 2, batch not a multiple of 8) to exercise tiling.
    B2 = 200
    x2 = jax.random.normal(jax.random.PRNGKey(1), (B2, 4), dtype=jnp.float32)
    out2 = jax.block_until_ready(mlp_forward(x2, packed))
    ref2 = ref_forward(x2, params)
    max_err2 = float(jnp.max(jnp.abs(out2 - ref2)))
    assert jnp.allclose(out2, ref2, atol=1e-4, rtol=1e-4), f"max abs err {max_err2}"

    print("KERNEL_OK")
</pallas_src>

<mosaic_0001>
module attributes {stable_mosaic.version = 11 : i64} {
  func.func @mlp_kernel(%arg0: i32, %arg1: memref<8x8xf32, #tpu.memory_space<vmem>>, %arg2: memref<904x256xf32, #tpu.memory_space<vmem>>, %arg3: memref<16x256xf32, #tpu.memory_space<vmem>>, %arg4: memref<8x128xf32, #tpu.memory_space<vmem>>) attributes {dimension_semantics = [#tpu.dimension_semantics<parallel>], iteration_bounds = array<i64: 1>, scalar_prefetch = 0 : i64, scratch_operands = 0 : i64, tpu.core_type = #tpu.core_type<tc>, window_params = [{transform_indices = @transform_0, window_bounds = array<i64: 8, 8>}, {pipeline_mode = #tpu.pipeline_mode<synchronous>, transform_indices = @transform_1, window_bounds = array<i64: 904, 256>}, {pipeline_mode = #tpu.pipeline_mode<synchronous>, transform_indices = @transform_2, window_bounds = array<i64: 16, 256>}, {transform_indices = @transform_3, window_bounds = array<i64: 8, 128>}]} {
    %c0 = arith.constant 0 : index
    %c0_0 = arith.constant 0 : index
    %0 = vector.load %arg1[%c0, %c0_0] : memref<8x8xf32, #tpu.memory_space<vmem>>, vector<8x8xf32>
    %c0_1 = arith.constant 0 : index
    %c0_2 = arith.constant 0 : index
    %1 = vector.load %arg2[%c0_1, %c0_2] : memref<904x256xf32, #tpu.memory_space<vmem>>, vector<8x256xf32>
    %c0_3 = arith.constant 0 : index
    %c0_4 = arith.constant 0 : index
    %2 = vector.load %arg3[%c0_3, %c0_4] : memref<16x256xf32, #tpu.memory_space<vmem>>, vector<1x256xf32>
    %c1 = arith.constant 1 : index
    %c0_5 = arith.constant 0 : index
    %3 = vector.load %arg3[%c1, %c0_5] : memref<16x256xf32, #tpu.memory_space<vmem>>, vector<1x256xf32>
    %c2 = arith.constant 2 : index
    %c0_6 = arith.constant 0 : index
    %4 = vector.load %arg3[%c2, %c0_6] : memref<16x256xf32, #tpu.memory_space<vmem>>, vector<1x256xf32>
    %cst = arith.constant dense<0.000000e+00> : vector<8x256xf32>
    %5 = tpu.matmul %0, %1, %cst {dimension_numbers = #tpu.dot_dimension_numbers<[1], [0], [0], [1], [0, 0, 1, 1], [], []>} : vector<8x8xf32>, vector<8x256xf32>, vector<8x256xf32> -> vector<8x256xf32>
    %6 = vector.broadcast %2 : vector<1x256xf32> to vector<8x256xf32>
    %7 = arith.addf %5, %6 : vector<8x256xf32>
    %cst_7 = arith.constant dense<0.000000e+00> : vector<8xf32>
    %8 = vector.multi_reduction <add>, %7, %cst_7 [1] : vector<8x256xf32> to vector<8xf32>
    %9 = vector.shape_cast %8 : vector<8xf32> to vector<8x1xf32>
    %10 = arith.mulf %7, %7 : vector<8x256xf32>
    %cst_8 = arith.constant dense<0.000000e+00> : vector<8xf32>
    %11 = vector.multi_reduction <add>, %10, %cst_8 [1] : vector<8x256xf32> to vector<8xf32>
    %12 = vector.shape_cast %11 : vector<8xf32> to vector<8x1xf32>
    %cst_9 = arith.constant 3.906250e-03 : f32
    %13 = vector.broadcast %cst_9 : f32 to vector<8x1xf32>
    %14 = arith.mulf %9, %13 : vector<8x1xf32>
    %cst_10 = arith.constant 3.906250e-03 : f32
    %15 = vector.broadcast %cst_10 : f32 to vector<8x1xf32>
    %16 = arith.mulf %12, %15 : vector<8x1xf32>
    %17 = arith.mulf %14, %14 : vector<8x1xf32>
    %18 = arith.subf %16, %17 : vector<8x1xf32>
    %19 = vector.broadcast %14 : vector<8x1xf32> to vector<8x256xf32>
    %20 = arith.subf %7, %19 : vector<8x256xf32>
    %cst_11 = arith.constant 9.99999974E-6 : f32
    %21 = vector.broadcast %cst_11 : f32 to vector<8x1xf32>
    %22 = arith.addf %18, %21 : vector<8x1xf32>
    %23 = math.rsqrt %22 : vector<8x1xf32>
    %24 = vector.broadcast %23 : vector<8x1xf32> to vector<8x256xf32>
    %25 = arith.mulf %20, %24 : vector<8x256xf32>
    %26 = vector.broadcast %3 : vector<1x256xf32> to vector<8x256xf32>
    %27 = arith.mulf %25, %26 : vector<8x256xf32>
    %28 = vector.broadcast %4 : vector<1x256xf32> to vector<8x256xf32>
    %29 = arith.addf %27, %28 : vector<8x256xf32>
    %cst_12 = arith.constant 5.000000e-01 : f32
    %30 = vector.broadcast %cst_12 : f32 to vector<8x256xf32>
    %31 = arith.mulf %30, %29 : vector<8x256xf32>
    %cst_13 = arith.constant 0.707106769 : f32
    %32 = vector.broadcast %cst_13 : f32 to vector<8x256xf32>
    %33 = arith.mulf %29, %32 : vector<8x256xf32>
    %34 = math.erf %33 : vector<8x256xf32>
    %cst_14 = arith.constant 1.000000e+00 : f32
    %35 = vector.broadcast %cst_14 : f32 to vector<8x256xf32>
    %36 = arith.addf %35, %34 : vector<8x256xf32>
    %37 = arith.mulf %31, %36 : vector<8x256xf32>
    %c8 = arith.constant 8 : index
    %c0_15 = arith.constant 0 : index
    %38 = vector.load %arg2[%c8, %c0_15] : memref<904x256xf32, #tpu.memory_space<vmem>>, vector<256x256xf32>
    %c3 = arith.constant 3 : index
    %c0_16 = arith.constant 0 : index
    %39 = vector.load %arg3[%c3, %c0_16] : memref<16x256xf32, #tpu.memory_space<vmem>>, vector<1x256xf32>
    %c4 = arith.constant 4 : index
    %c0_17 = arith.constant 0 : index
    %40 = vector.load %arg3[%c4, %c0_17] : memref<16x256xf32, #tpu.memory_space<vmem>>, vector<1x256xf32>
    %c5 = arith.constant 5 : index
    %c0_18 = arith.constant 0 : index
    %41 = vector.load %arg3[%c5, %c0_18] : memref<16x256xf32, #tpu.memory_space<vmem>>, vector<1x256xf32>
    %cst_19 = arith.constant dense<0.000000e+00> : vector<8x256xf32>
    %42 = tpu.matmul %37, %38, %cst_19 {dimension_numbers = #tpu.dot_dimension_numbers<[1], [0], [0], [1], [0, 0, 1, 1], [], []>} : vector<8x256xf32>, vector<256x256xf32>, vector<8x256xf32> -> vector<8x256xf32>
    %43 = vector.broadcast %39 : vector<1x256xf32> to vector<8x256xf32>
    %44 = arith.addf %42, %43 : vector<8x256xf32>
    %cst_20 = arith.constant dense<0.000000e+00> : vector<8xf32>
    %45 = vector.multi_reduction <add>, %44, %cst_20 [1] : vector<8x256xf32> to vector<8xf32>
    %46 = vector.shape_cast %45 : vector<8xf32> to vector<8x1xf32>
    %47 = arith.mulf %44, %44 : vector<8x256xf32>
    %cst_21 = arith.constant dense<0.000000e+00> : vector<8xf32>
    %48 = vector.multi_reduction <add>, %47, %cst_21 [1] : vector<8x256xf32> to vector<8xf32>
    %49 = vector.shape_cast %48 : vector<8xf32> to vector<8x1xf32>
    %cst_22 = arith.constant 3.906250e-03 : f32
    %50 = vector.broadcast %cst_22 : f32 to vector<8x1xf32>
    %51 = arith.mulf %46, %50 : vector<8x1xf32>
    %cst_23 = arith.constant 3.906250e-03 : f32
    %52 = vector.broadcast %cst_23 : f32 to vector<8x1xf32>
    %53 = arith.mulf %49, %52 : vector<8x1xf32>
    %54 = arith.mulf %51, %51 : vector<8x1xf32>
    %55 = arith.subf %53, %54 : vector<8x1xf32>
    %56 = vector.broadcast %51 : vector<8x1xf32> to vector<8x256xf32>
    %57 = arith.subf %44, %56 : vector<8x256xf32>
    %cst_24 = arith.constant 9.99999974E-6 : f32
    %58 = vector.broadcast %cst_24 : f32 to vector<8x1xf32>
    %59 = arith.addf %55, %58 : vector<8x1xf32>
    %60 = math.rsqrt %59 : vector<8x1xf32>
    %61 = vector.broadcast %60 : vector<8x1xf32> to vector<8x256xf32>
    %62 = arith.mulf %57, %61 : vector<8x256xf32>
    %63 = vector.broadcast %40 : vector<1x256xf32> to vector<8x256xf32>
    %64 = arith.mulf %62, %63 : vector<8x256xf32>
    %65 = vector.broadcast %41 : vector<1x256xf32> to vector<8x256xf32>
    %66 = arith.addf %64, %65 : vector<8x256xf32>
    %cst_25 = arith.constant 5.000000e-01 : f32
    %67 = vector.broadcast %cst_25 : f32 to vector<8x256xf32>
    %68 = arith.mulf %67, %66 : vector<8x256xf32>
    %cst_26 = arith.constant 0.707106769 : f32
    %69 = vector.broadcast %cst_26 : f32 to vector<8x256xf32>
    %70 = arith.mulf %66, %69 : vector<8x256xf32>
    %71 = math.erf %70 : vector<8x256xf32>
    %cst_27 = arith.constant 1.000000e+00 : f32
    %72 = vector.broadcast %cst_27 : f32 to vector<8x256xf32>
    %73 = arith.addf %72, %71 : vector<8x256xf32>
    %74 = arith.mulf %68, %73 : vector<8x256xf32>
    %c264 = arith.constant 264 : index
    %c0_28 = arith.constant 0 : index
    %75 = vector.load %arg2[%c264, %c0_28] : memref<904x256xf32, #tpu.memory_space<vmem>>, vector<256x128xf32>
    %c6 = arith.constant 6 : index
    %c0_29 = arith.constant 0 : index
    %76 = vector.load %arg3[%c6, %c0_29] : memref<16x256xf32, #tpu.memory_space<vmem>>, vector<1x128xf32>
    %c7 = arith.constant 7 : index
    %c0_30 = arith.constant 0 : index
    %77 = vector.load %arg3[%c7, %c0_30] : memref<16x256xf32, #tpu.memory_space<vmem>>, vector<1x128xf32>
    %c8_31 = arith.constant 8 : index
    %c0_32 = arith.constant 0 : index
    %78 = vector.load %arg3[%c8_31, %c0_32] : memref<16x256xf32, #tpu.memory_space<vmem>>, vector<1x128xf32>
    %cst_33 = arith.constant dense<0.000000e+00> : vector<8x128xf32>
    %79 = tpu.matmul %74, %75, %cst_33 {dimension_numbers = #tpu.dot_dimension_numbers<[1], [0], [0], [1], [0, 0, 1, 1], [], []>} : vector<8x256xf32>, vector<256x128xf32>, vector<8x128xf32> -> vector<8x128xf32>
    %80 = vector.broadcast %76 : vector<1x128xf32> to vector<8x128xf32>
    %81 = arith.addf %79, %80 : vector<8x128xf32>
    %cst_34 = arith.constant dense<0.000000e+00> : vector<8xf32>
    %82 = vector.multi_reduction <add>, %81, %cst_34 [1] : vector<8x128xf32> to vector<8xf32>
    %83 = vector.shape_cast %82 : vector<8xf32> to vector<8x1xf32>
    %84 = arith.mulf %81, %81 : vector<8x128xf32>
    %cst_35 = arith.constant dense<0.000000e+00> : vector<8xf32>
    %85 = vector.multi_reduction <add>, %84, %cst_35 [1] : vector<8x128xf32> to vector<8xf32>
    %86 = vector.shape_cast %85 : vector<8xf32> to vector<8x1xf32>
    %cst_36 = arith.constant 7.812500e-03 : f32
    %87 = vector.broadcast %cst_36 : f32 to vector<8x1xf32>
    %88 = arith.mulf %83, %87 : vector<8x1xf32>
    %cst_37 = arith.constant 7.812500e-03 : f32
    %89 = vector.broadcast %cst_37 : f32 to vector<8x1xf32>
    %90 = arith.mulf %86, %89 : vector<8x1xf32>
    %91 = arith.mulf %88, %88 : vector<8x1xf32>
    %92 = arith.subf %90, %91 : vector<8x1xf32>
    %93 = vector.broadcast %88 : vector<8x1xf32> to vector<8x128xf32>
    %94 = arith.subf %81, %93 : vector<8x128xf32>
    %cst_38 = arith.constant 9.99999974E-6 : f32
    %95 = vector.broadcast %cst_38 : f32 to vector<8x1xf32>
    %96 = arith.addf %92, %95 : vector<8x1xf32>
    %97 = math.rsqrt %96 : vector<8x1xf32>
    %98 = vector.broadcast %97 : vector<8x1xf32> to vector<8x128xf32>
    %99 = arith.mulf %94, %98 : vector<8x128xf32>
    %100 = vector.broadcast %77 : vector<1x128xf32> to vector<8x128xf32>
    %101 = arith.mulf %99, %100 : vector<8x128xf32>
    %102 = vector.broadcast %78 : vector<1x128xf32> to vector<8x128xf32>
    %103 = arith.addf %101, %102 : vector<8x128xf32>
    %cst_39 = arith.constant 5.000000e-01 : f32
    %104 = vector.broadcast %cst_39 : f32 to vector<8x128xf32>
    %105 = arith.mulf %104, %103 : vector<8x128xf32>
    %cst_40 = arith.constant 0.707106769 : f32
    %106 = vector.broadcast %cst_40 : f32 to vector<8x128xf32>
    %107 = arith.mulf %103, %106 : vector<8x128xf32>
    %108 = math.erf %107 : vector<8x128xf32>
    %cst_41 = arith.constant 1.000000e+00 : f32
    %109 = vector.broadcast %cst_41 : f32 to vector<8x128xf32>
    %110 = arith.addf %109, %108 : vector<8x128xf32>
    %111 = arith.mulf %105, %110 : vector<8x128xf32>
    %c520 = arith.constant 520 : index
    %c0_42 = arith.constant 0 : index
    %112 = vector.load %arg2[%c520, %c0_42] : memref<904x256xf32, #tpu.memory_space<vmem>>, vector<128x128xf32>
    %c9 = arith.constant 9 : index
    %c0_43 = arith.constant 0 : index
    %113 = vector.load %arg3[%c9, %c0_43] : memref<16x256xf32, #tpu.memory_space<vmem>>, vector<1x128xf32>
    %c10 = arith.constant 10 : index
    %c0_44 = arith.constant 0 : index
    %114 = vector.load %arg3[%c10, %c0_44] : memref<16x256xf32, #tpu.memory_space<vmem>>, vector<1x128xf32>
    %c11 = arith.constant 11 : index
    %c0_45 = arith.constant 0 : index
    %115 = vector.load %arg3[%c11, %c0_45] : memref<16x256xf32, #tpu.memory_space<vmem>>, vector<1x128xf32>
    %cst_46 = arith.constant dense<0.000000e+00> : vector<8x128xf32>
    %116 = tpu.matmul %111, %112, %cst_46 {dimension_numbers = #tpu.dot_dimension_numbers<[1], [0], [0], [1], [0, 0, 1, 1], [], []>} : vector<8x128xf32>, vector<128x128xf32>, vector<8x128xf32> -> vector<8x128xf32>
    %117 = vector.broadcast %113 : vector<1x128xf32> to vector<8x128xf32>
    %118 = arith.addf %116, %117 : vector<8x128xf32>
    %cst_47 = arith.constant dense<0.000000e+00> : vector<8xf32>
    %119 = vector.multi_reduction <add>, %118, %cst_47 [1] : vector<8x128xf32> to vector<8xf32>
    %120 = vector.shape_cast %119 : vector<8xf32> to vector<8x1xf32>
    %121 = arith.mulf %118, %118 : vector<8x128xf32>
    %cst_48 = arith.constant dense<0.000000e+00> : vector<8xf32>
    %122 = vector.multi_reduction <add>, %121, %cst_48 [1] : vector<8x128xf32> to vector<8xf32>
    %123 = vector.shape_cast %122 : vector<8xf32> to vector<8x1xf32>
    %cst_49 = arith.constant 1.562500e-02 : f32
    %124 = vector.broadcast %cst_49 : f32 to vector<8x1xf32>
    %125 = arith.mulf %120, %124 : vector<8x1xf32>
    %cst_50 = arith.constant 1.562500e-02 : f32
    %126 = vector.broadcast %cst_50 : f32 to vector<8x1xf32>
    %127 = arith.mulf %123, %126 : vector<8x1xf32>
    %128 = arith.mulf %125, %125 : vector<8x1xf32>
    %129 = arith.subf %127, %128 : vector<8x1xf32>
    %130 = vector.broadcast %125 : vector<8x1xf32> to vector<8x128xf32>
    %131 = arith.subf %118, %130 : vector<8x128xf32>
    %cst_51 = arith.constant 9.99999974E-6 : f32
    %132 = vector.broadcast %cst_51 : f32 to vector<8x1xf32>
    %133 = arith.addf %129, %132 : vector<8x1xf32>
    %134 = math.rsqrt %133 : vector<8x1xf32>
    %135 = vector.broadcast %134 : vector<8x1xf32> to vector<8x128xf32>
    %136 = arith.mulf %131, %135 : vector<8x128xf32>
    %137 = vector.broadcast %114 : vector<1x128xf32> to vector<8x128xf32>
    %138 = arith.mulf %136, %137 : vector<8x128xf32>
    %139 = vector.broadcast %115 : vector<1x128xf32> to vector<8x128xf32>
    %140 = arith.addf %138, %139 : vector<8x128xf32>
    %cst_52 = arith.constant 5.000000e-01 : f32
    %141 = vector.broadcast %cst_52 : f32 to vector<8x128xf32>
    %142 = arith.mulf %141, %140 : vector<8x128xf32>
    %cst_53 = arith.constant 0.707106769 : f32
    %143 = vector.broadcast %cst_53 : f32 to vector<8x128xf32>
    %144 = arith.mulf %140, %143 : vector<8x128xf32>
    %145 = math.erf %144 : vector<8x128xf32>
    %cst_54 = arith.constant 1.000000e+00 : f32
    %146 = vector.broadcast %cst_54 : f32 to vector<8x128xf32>
    %147 = arith.addf %146, %145 : vector<8x128xf32>
    %148 = arith.mulf %142, %147 : vector<8x128xf32>
    %c648 = arith.constant 648 : index
    %c0_55 = arith.constant 0 : index
    %149 = vector.load %arg2[%c648, %c0_55] : memref<904x256xf32, #tpu.memory_space<vmem>>, vector<128x128xf32>
    %c12 = arith.constant 12 : index
    %c0_56 = arith.constant 0 : index
    %150 = vector.load %arg3[%c12, %c0_56] : memref<16x256xf32, #tpu.memory_space<vmem>>, vector<1x128xf32>
    %c13 = arith.constant 13 : index
    %c0_57 = arith.constant 0 : index
    %151 = vector.load %arg3[%c13, %c0_57] : memref<16x256xf32, #tpu.memory_space<vmem>>, vector<1x128xf32>
    %c14 = arith.constant 14 : index
    %c0_58 = arith.constant 0 : index
    %152 = vector.load %arg3[%c14, %c0_58] : memref<16x256xf32, #tpu.memory_space<vmem>>, vector<1x128xf32>
    %cst_59 = arith.constant dense<0.000000e+00> : vector<8x128xf32>
    %153 = tpu.matmul %148, %149, %cst_59 {dimension_numbers = #tpu.dot_dimension_numbers<[1], [0], [0], [1], [0, 0, 1, 1], [], []>} : vector<8x128xf32>, vector<128x128xf32>, vector<8x128xf32> -> vector<8x128xf32>
    %154 = vector.broadcast %150 : vector<1x128xf32> to vector<8x128xf32>
    %155 = arith.addf %153, %154 : vector<8x128xf32>
    %cst_60 = arith.constant dense<0.000000e+00> : vector<8xf32>
    %156 = vector.multi_reduction <add>, %155, %cst_60 [1] : vector<8x128xf32> to vector<8xf32>
    %157 = vector.shape_cast %156 : vector<8xf32> to vector<8x1xf32>
    %158 = arith.mulf %155, %155 : vector<8x128xf32>
    %cst_61 = arith.constant dense<0.000000e+00> : vector<8xf32>
    %159 = vector.multi_reduction <add>, %158, %cst_61 [1] : vector<8x128xf32> to vector<8xf32>
    %160 = vector.shape_cast %159 : vector<8xf32> to vector<8x1xf32>
    %cst_62 = arith.constant 1.562500e-02 : f32
    %161 = vector.broadcast %cst_62 : f32 to vector<8x1xf32>
    %162 = arith.mulf %157, %161 : vector<8x1xf32>
    %cst_63 = arith.constant 1.562500e-02 : f32
    %163 = vector.broadcast %cst_63 : f32 to vector<8x1xf32>
    %164 = arith.mulf %160, %163 : vector<8x1xf32>
    %165 = arith.mulf %162, %162 : vector<8x1xf32>
    %166 = arith.subf %164, %165 : vector<8x1xf32>
    %167 = vector.broadcast %162 : vector<8x1xf32> to vector<8x128xf32>
    %168 = arith.subf %155, %167 : vector<8x128xf32>
    %cst_64 = arith.constant 9.99999974E-6 : f32
    %169 = vector.broadcast %cst_64 : f32 to vector<8x1xf32>
    %170 = arith.addf %166, %169 : vector<8x1xf32>
    %171 = math.rsqrt %170 : vector<8x1xf32>
    %172 = vector.broadcast %171 : vector<8x1xf32> to vector<8x128xf32>
    %173 = arith.mulf %168, %172 : vector<8x128xf32>
    %174 = vector.broadcast %151 : vector<1x128xf32> to vector<8x128xf32>
    %175 = arith.mulf %173, %174 : vector<8x128xf32>
    %176 = vector.broadcast %152 : vector<1x128xf32> to vector<8x128xf32>
    %177 = arith.addf %175, %176 : vector<8x128xf32>
    %cst_65 = arith.constant 5.000000e-01 : f32
    %178 = vector.broadcast %cst_65 : f32 to vector<8x128xf32>
    %179 = arith.mulf %178, %177 : vector<8x128xf32>
    %cst_66 = arith.constant 0.707106769 : f32
    %180 = vector.broadcast %cst_66 : f32 to vector<8x128xf32>
    %181 = arith.mulf %177, %180 : vector<8x128xf32>
    %182 = math.erf %181 : vector<8x128xf32>
    %cst_67 = arith.constant 1.000000e+00 : f32
    %183 = vector.broadcast %cst_67 : f32 to vector<8x128xf32>
    %184 = arith.addf %183, %182 : vector<8x128xf32>
    %185 = arith.mulf %179, %184 : vector<8x128xf32>
    %c776 = arith.constant 776 : index
    %c0_68 = arith.constant 0 : index
    %186 = vector.load %arg2[%c776, %c0_68] : memref<904x256xf32, #tpu.memory_space<vmem>>, vector<128x128xf32>
    %c15 = arith.constant 15 : index
    %c0_69 = arith.constant 0 : index
    %187 = vector.load %arg3[%c15, %c0_69] : memref<16x256xf32, #tpu.memory_space<vmem>>, vector<1x128xf32>
    %cst_70 = arith.constant dense<0.000000e+00> : vector<8x128xf32>
    %188 = tpu.matmul %185, %186, %cst_70 {dimension_numbers = #tpu.dot_dimension_numbers<[1], [0], [0], [1], [0, 0, 1, 1], [], []>} : vector<8x128xf32>, vector<128x128xf32>, vector<8x128xf32> -> vector<8x128xf32>
    %189 = vector.broadcast %187 : vector<1x128xf32> to vector<8x128xf32>
    %190 = arith.addf %188, %189 : vector<8x128xf32>
    %191 = arith.negf %190 : vector<8x128xf32>
    %192 = math.exp %191 : vector<8x128xf32>
    %cst_71 = arith.constant 1.000000e+00 : f32
    %193 = vector.broadcast %cst_71 : f32 to vector<8x128xf32>
    %194 = arith.addf %193, %192 : vector<8x128xf32>
    %195 = arith.divf %193, %194 : vector<8x128xf32>
    %c0_72 = arith.constant 0 : index
    %c0_73 = arith.constant 0 : index
    %196 = vector.load %arg4[%c0_72, %c0_73] : memref<8x128xf32, #tpu.memory_space<vmem>>, vector<8x128xf32>
    tpu.vector_store %arg4[%c0_72, %c0_73], %195 {strides = array<i32>} : memref<8x128xf32, #tpu.memory_space<vmem>>, vector<8x128xf32>,
    return
  }
  func.func @transform_0(%arg0: i32) -> (i32, i32) {
    %c0_i32 = arith.constant 0 : i32
    %c0_i32_0 = arith.constant 0 : i32
    return %arg0, %c0_i32 : i32, i32
  }
  func.func @transform_1(%arg0: i32) -> (i32, i32) {
    %c0_i32 = arith.constant 0 : i32
    %c0_i32_0 = arith.constant 0 : i32
    %c0_i32_1 = arith.constant 0 : i32
    return %c0_i32, %c0_i32_0 : i32, i32
  }
  func.func @transform_2(%arg0: i32) -> (i32, i32) {
    %c0_i32 = arith.constant 0 : i32
    %c0_i32_0 = arith.constant 0 : i32
    %c0_i32_1 = arith.constant 0 : i32
    return %c0_i32, %c0_i32_0 : i32, i32
  }
  func.func @transform_3(%arg0: i32) -> (i32, i32) {
    %c0_i32 = arith.constant 0 : i32
    %c0_i32_0 = arith.constant 0 : i32
    return %arg0, %c0_i32 : i32, i32
  }
}

</mosaic_0001>

<llo_original>
// kernel: tpu_custom_call.1
$region0: #{tpu_custom_call.1}
  #allocation0 [shape = 'u32[]', space=smem, size = 0x4, offset = 0x4, fixed_abs, tag = 'smem constant byte address 0x4 - core index']
  #allocation1 [shape = 'u32[144,128]{1,0:T(1,128)}', space=vmem, size = 0x12000, scoped, tag = 'internal scratch']
  %s0 = inlined_call_operand.hbm [shape: f32[8,8], index: 0, kind: input, shape index: {}]
  %s1 = inlined_call_operand.hbm [shape: f32[904,256], index: 1, kind: input, shape index: {}]
  %s2 = inlined_call_operand.hbm [shape: f32[16,256], index: 2, kind: input, shape index: {}]
  %s3 = inlined_call_operand.hbm [shape: f32[8,128], index: 3, kind: output, shape index: {}]
  %s4 = sld [smem:[#allocation0]]
  $region34: #{tpu_custom_call.1} parent=0
    _
  %s6 = ssub.s32 1, %s4
  %s7 = scalar_select 0, %s6, %s4
  $region1: #{tpu_custom_call.1} parent=0
    #allocation2 [shape = 'u8[4096]{0}', space=vmem, size = 0x1000, scoped, tag = 'input window, operand 0, single buffered']
    #allocation3 [shape = 's32[1]{0}', space=sflag, size = 0x4, scoped, tag = 'scoped memory for tpu_custom_call.1']
    #allocation4 [shape = 's32[1]{0}', space=sflag, size = 0x4, scoped, tag = 'scoped memory for tpu_custom_call.1']
    #allocation5 [shape = 'u8[925696]{0}', space=vmem, size = 0xe2000, scoped, tag = 'input window, operand 1, single buffered']
    #allocation6 [shape = 's32[1]{0}', space=sflag, size = 0x4, scoped, tag = 'scoped memory for tpu_custom_call.1']
    #allocation7 [shape = 'u8[16384]{0}', space=vmem, size = 0x4000, scoped, tag = 'input window, operand 2, single buffered']
    #allocation8 [shape = 'u8[4096]{0}', space=vmem, size = 0x1000, scoped, tag = 'output window, operand 0, single buffered']
    %8 = vsyncpa [#allocation3], 0
    %9 = vsyncpa [#allocation6], 0
    %10 = vsyncpa [#allocation4], 0
    // Predicated region
    $region2: #{tpu_custom_call.1} parent=1 // pred_check
      _
    $region3: #{tpu_custom_call.1} parent=1 // pred_check_branch
      %12 = sbr.rel (0) target = $region5
    $region4: #{tpu_custom_call.1} parent=1 // pred_region
      %s14 = ssub.s32 128, 128
      %15 = vsyncadd [#allocation3], %s14
      %s17 = sshll.u32 [#allocation2], 4
      %s18 = int_to_ptr.vmem [resolvable:$true] %s17
      %20 = dma.hbm_to_vmem [thread:$0]  %s0, 128, %s18, [#allocation3]
    $region5: #{tpu_custom_call.1} parent=1 // pred_fallthru
      _
    // Predicated region
    $region6: #{tpu_custom_call.1} parent=1 // pred_check
      _
    $region7: #{tpu_custom_call.1} parent=1 // pred_check_branch
      %22 = sbr.rel (0) target = $region9
    $region8: #{tpu_custom_call.1} parent=1 // pred_region
      %s24 = ssub.s32 28928, 28928
      %25 = vsyncadd [#allocation6], %s24
      %s26 = sshll.u32 [#allocation5], 4
      %s27 = int_to_ptr.vmem [resolvable:$true] %s26
      %32 = dma.hbm_to_vmem [thread:$0]  %s1, 28928, %s27, [#allocation6], 256, 256, 16
    $region9: #{tpu_custom_call.1} parent=1 // pred_fallthru
      _
    // Predicated region
    $region10: #{tpu_custom_call.1} parent=1 // pred_check
      _
    $region11: #{tpu_custom_call.1} parent=1 // pred_check_branch
      %34 = sbr.rel (0) target = $region13
    $region12: #{tpu_custom_call.1} parent=1 // pred_region
      %s36 = ssub.s32 512, 512
      %37 = vsyncadd [#allocation6], %s36
      %s38 = sshll.u32 [#allocation7], 4
      %s39 = int_to_ptr.vmem [resolvable:$true] %s38
      %44 = dma.hbm_to_vmem [thread:$0]  %s2, 512, %s39, [#allocation6], 256, 256, 16
    $region13: #{tpu_custom_call.1} parent=1 // pred_fallthru
      _
    // Predicated region
    $region14: #{tpu_custom_call.1} parent=1 // pred_check
      _
    $region15: #{tpu_custom_call.1} parent=1 // pred_check_branch
      %46 = sbr.rel (0) target = $region17
    $region16: #{tpu_custom_call.1} parent=1 // pred_region
      %47 = dma.done [#allocation3], 128
    $region17: #{tpu_custom_call.1} parent=1 // pred_fallthru
      _
    // Predicated region
    $region18: #{tpu_custom_call.1} parent=1 // pred_check
      _
    $region19: #{tpu_custom_call.1} parent=1 // pred_check_branch
      %49 = sbr.rel (0) target = $region21
    $region20: #{tpu_custom_call.1} parent=1 // pred_region
      %50 = dma.done [#allocation6], 28928
    $region21: #{tpu_custom_call.1} parent=1 // pred_fallthru
      _
    // Predicated region
    $region22: #{tpu_custom_call.1} parent=1 // pred_check
      _
    $region23: #{tpu_custom_call.1} parent=1 // pred_check_branch
      %52 = sbr.rel (0) target = $region25
    $region24: #{tpu_custom_call.1} parent=1 // pred_region
      %53 = dma.done [#allocation6], 512
    $region25: #{tpu_custom_call.1} parent=1 // pred_fallthru
      _
    %v54 = vld [vmem:[#allocation2] sm:$0xff]
    %v55 = vld [vmem:[#allocation5] sm:$0xff]
    %v56 = vld [vmem:[#allocation5 + $0x8] sm:$0xff]
    %v57 = vld [vmem:[#allocation7] ss:$8 sm:$0x3]
    %s58 = scalar_lea.vmem [#allocation7], 1
    %v59 = vld [vmem:[%s58] ss:$8 sm:$0x3]
    %s60 = scalar_lea.vmem [#allocation7], 2
    %v61 = vld [vmem:[%s60] ss:$8 sm:$0x3]
    %v63 = vlaneseq
    %v64 = vshrl.u32 %v63, 7
    %v65 = vsub.s32 0, %v64
    %v66 = vrot.slane %v57, %v65
    %v67 = vlaneseq
    %v68 = vshrl.u32 %v67, 7
    %v69 = vsub.s32 1, %v68
    %v70 = vrot.slane %v57, %v69
    %vm73 = vcmask 64512
    %v75 = vsel %vm73, %v54, 0
    %77 = vmatprep.subr.mxu0 %v56
    %78 = vmatpush1.msra.mxu0 %v55
    %79 = vmatprep.subr.mxu0 0.0
    %80 = vmatpush1.msra.mxu0 0.0
    %81 = vmatprep.subr.mxu0 0.0
    %82 = vmatpush1.msra.mxu0 0.0
    %83 = vmatprep.subr.mxu0 0.0
    %84 = vmatpush1.msra.mxu0 0.0
    %85 = vmatprep.subr.mxu0 0.0
    %86 = vmatpush1.msra.mxu0 0.0
    %87 = vmatprep.subr.mxu0 0.0
    %88 = vmatpush1.msra.mxu0 0.0
    %89 = vmatprep.subr.mxu0 0.0
    %90 = vmatpush1.msra.mxu0 0.0
    %91 = vmatprep.subr.mxu0 0.0
    %92 = vmatpush1.msra.mxu0 0.0
    %93 = vmatprep.subr.mxu0 0.0
    %94 = vmatpush1.msra.mxu0 0.0
    %95 = vmatprep.subr.mxu0 0.0
    %96 = vmatpush1.msra.mxu0 0.0
    %97 = vmatprep.subr.mxu0 0.0
    %98 = vmatpush1.msra.mxu0 0.0
    %99 = vmatprep.subr.mxu0 0.0
    %100 = vmatpush1.msra.mxu0 0.0
    %101 = vmatprep.subr.mxu0 0.0
    %102 = vmatpush1.msra.mxu0 0.0
    %103 = vmatprep.subr.mxu0 0.0
    %104 = vmatpush1.msra.mxu0 0.0
    %105 = vmatprep.subr.mxu0 0.0
    %106 = vmatpush1.msra.mxu0 0.0
    %107 = vmatprep.subr.mxu0 0.0
    %108 = vmatpush1.msra.mxu0 0.0
    %109 = vmatprep.subr.mxu0 0.0
    %110 = vmatpush1.msra.mxu0 0.0
    %111 = vmatprep.subr.mxu0 0.0
    %112 = vmatpush1.msra.mxu0 0.0
    %113 = vmatprep.subr.mxu0 0.0
    %114 = vmatpush1.msra.mxu0 0.0
    %115 = vmatprep.subr.mxu0 0.0
    %116 = vmatpush1.msra.mxu0 0.0
    %117 = vmatprep.subr.mxu0 0.0
    %118 = vmatpush1.msra.mxu0 0.0
    %119 = vmatprep.subr.mxu0 0.0
    %120 = vmatpush1.msra.mxu0 0.0
    %121 = vmatprep.subr.mxu0 0.0
    %122 = vmatpush1.msra.mxu0 0.0
    %123 = vmatprep.subr.mxu0 0.0
    %124 = vmatpush1.msra.mxu0 0.0
    %125 = vmatprep.subr.mxu0 0.0
    %126 = vmatpush1.msra.mxu0 0.0
    %127 = vmatprep.subr.mxu0 0.0
    %128 = vmatpush1.msra.mxu0 0.0
    %129 = vmatprep.subr.mxu0 0.0
    %130 = vmatpush1.msra.mxu0 0.0
    %131 = vmatprep.subr.mxu0 0.0
    %132 = vmatpush1.msra.mxu0 0.0
    %133 = vmatprep.subr.mxu0 0.0
    %134 = vmatpush1.msra.mxu0 0.0
    %135 = vmatprep.subr.mxu0 0.0
    %136 = vmatpush1.msra.mxu0 0.0
    %137 = vmatprep.subr.mxu0 0.0
    %138 = vmatpush1.msra.mxu0 0.0
    %139 = vmatprep.subr.mxu0 0.0
    %140 = vmatpush1.msra.mxu0 0.0
    %141 = vmatprep.mubr.f32.mxu0 0.0
    %142 = vmatmul.mubr.f32.gmra.mrb[0].mxu0 %v75
    %v143 = vpop.f32.mrb[0].mxu0
    %v144 = vadd.f32 %v66, %v143
    %v145 = vpop.f32.mrb[0].mxu0
    %v146 = vadd.f32 %v70, %v145
    %147 = vdwg.mxu0
    %v148 = vadd.f32 %v144, %v146
    %149 = vadd.xlane.f32.xlu0 %v148
    %v150 = vpop.xlane.xlu0 %149
    %v151 = vmul.f32 %v144, %v144
    %v152 = vmul.f32 %v146, %v146
    %v153 = vadd.f32 %v151, %v152
    %154 = vadd.xlane.f32.xlu0 %v153
    %v155 = vpop.xlane.xlu0 %154
    %v156 = vmul.f32 %v150, 0.00390625
    %v157 = vmul.f32 %v155, 0.00390625
    %v158 = vmul.f32 %v156, %v156
    %v159 = vsub.f32 %v157, %v158
    %v160 = vsub.f32 %v144, %v156
    %v161 = vsub.f32 %v146, %v156
    %v162 = vadd.f32 %v159, 1e-05
    %v163 = vrsqrt.pop %v162
    %v164 = vmul.f32 %v160, %v163
    %v165 = vmul.f32 %v161, %v163
    %v167 = vlaneseq
    %v168 = vshrl.u32 %v167, 7
    %v169 = vsub.s32 0, %v168
    %v170 = vrot.slane %v59, %v169
    %v171 = vlaneseq
    %v172 = vshrl.u32 %v171, 7
    %v173 = vsub.s32 1, %v172
    %v174 = vrot.slane %v59, %v173
    %v177 = vmul.f32 %v164, %v170
    %v178 = vmul.f32 %v165, %v174
    %v180 = vlaneseq
    %v181 = vshrl.u32 %v180, 7
    %v182 = vsub.s32 0, %v181
    %v183 = vrot.slane %v61, %v182
    %v184 = vlaneseq
    %v185 = vshrl.u32 %v184, 7
    %v186 = vsub.s32 1, %v185
    %v187 = vrot.slane %v61, %v186
    %v190 = vadd.f32 %v177, %v183
    %v191 = vadd.f32 %v178, %v187
    %v192 = vmul.f32 %v190, 0.5
    %v193 = vmul.f32 %v191, 0.5
    %v194 = vmul.f32 %v190, 0.70710677
    %v195 = vmul.f32 %v191, 0.70710677
    %v196 = verf.f32.pop %v194
    %v197 = verf.f32.pop %v195
    %v198 = vadd.f32 %v196, 1.0
    %v199 = vadd.f32 %v197, 1.0
    %v200 = vmul.f32 %v192, %v198
    %v201 = vmul.f32 %v193, %v199
    %v202 = vld [vmem:[#allocation5 + $0x10] sm:$0xff]
    %v203 = vld [vmem:[#allocation5 + $0x18] sm:$0xff]
    %v204 = vld [vmem:[#allocation5 + $0x20] sm:$0xff]
    %v205 = vld [vmem:[#allocation5 + $0x28] sm:$0xff]
    %v206 = vld [vmem:[#allocation5 + $0x30] sm:$0xff]
    %v207 = vld [vmem:[#allocation5 + $0x38] sm:$0xff]
    %v208 = vld [vmem:[#allocation5 + $0x40] sm:$0xff]
    %v209 = vld [vmem:[#allocation5 + $0x48] sm:$0xff]
    %v210 = vld [vmem:[#allocation5 + $0x50] sm:$0xff]
    %v211 = vld [vmem:[#allocation5 + $0x58] sm:$0xff]
    %v212 = vld [vmem:[#allocation5 + $0x60] sm:$0xff]
    %v213 = vld [vmem:[#allocation5 + $0x68] sm:$0xff]
    %v214 = vld [vmem:[#allocation5 + $0x70] sm:$0xff]
    %v215 = vld [vmem:[#allocation5 + $0x78] sm:$0xff]
    %v216 = vld [vmem:[#allocation5 + $0x80] sm:$0xff]
    %v217 = vld [vmem:[#allocation5 + $0x88] sm:$0xff]
    %v218 = vld [vmem:[#allocation5 + $0x90] sm:$0xff]
    %v219 = vld [vmem:[#allocation5 + $0x98] sm:$0xff]
    %v220 = vld [vmem:[#allocation5 + $0xa0] sm:$0xff]
    %v221 = vld [vmem:[#allocation5 + $0xa8] sm:$0xff]
    %v222 = vld [vmem:[#allocation5 + $0xb0] sm:$0xff]
    %v223 = vld [vmem:[#allocation5 + $0xb8] sm:$0xff]
    %v224 = vld [vmem:[#allocation5 + $0xc0] sm:$0xff]
    %v225 = vld [vmem:[#allocation5 + $0xc8] sm:$0xff]
    %v226 = vld [vmem:[#allocation5 + $0xd0] sm:$0xff]
    %v227 = vld [vmem:[#allocation5 + $0xd8] sm:$0xff]
    %v228 = vld [vmem:[#allocation5 + $0xe0] sm:$0xff]
    %v229 = vld [vmem:[#allocation5 + $0xe8] sm:$0xff]
    %v230 = vld [vmem:[#allocation5 + $0xf0] sm:$0xff]
    %v231 = vld [vmem:[#allocation5 + $0xf8] sm:$0xff]
    %v232 = vld [vmem:[#allocation5 + $0x100] sm:$0xff]
    %v233 = vld [vmem:[#allocation5 + $0x108] sm:$0xff]
    %v234 = vld [vmem:[#allocation5 + $0x110] sm:$0xff]
    %v235 = vld [vmem:[#allocation5 + $0x118] sm:$0xff]
    %v236 = vld [vmem:[#allocation5 + $0x120] sm:$0xff]
    %v237 = vld [vmem:[#allocation5 + $0x128] sm:$0xff]
    %v238 = vld [vmem:[#allocation5 + $0x130] sm:$0xff]
    %v239 = vld [vmem:[#allocation5 + $0x138] sm:$0xff]
    %v240 = vld [vmem:[#allocation5 + $0x140] sm:$0xff]
    %v241 = vld [vmem:[#allocation5 + $0x148] sm:$0xff]
    %v242 = vld [vmem:[#allocation5 + $0x150] sm:$0xff]
    %v243 = vld [vmem:[#allocation5 + $0x158] sm:$0xff]
    %v244 = vld [vmem:[#allocation5 + $0x160] sm:$0xff]
    %v245 = vld [vmem:[#allocation5 + $0x168] sm:$0xff]
    %v246 = vld [vmem:[#allocation5 + $0x170] sm:$0xff]
    %v247 = vld [vmem:[#allocation5 + $0x178] sm:$0xff]
    %v248 = vld [vmem:[#allocation5 + $0x180] sm:$0xff]
    %v249 = vld [vmem:[#allocation5 + $0x188] sm:$0xff]
    %v250 = vld [vmem:[#allocation5 + $0x190] sm:$0xff]
    %v251 = vld [vmem:[#allocation5 + $0x198] sm:$0xff]
    %v252 = vld [vmem:[#allocation5 + $0x1a0] sm:$0xff]
    %v253 = vld [vmem:[#allocation5 + $0x1a8] sm:$0xff]
    %v254 = vld [vmem:[#allocation5 + $0x1b0] sm:$0xff]
    %v255 = vld [vmem:[#allocation5 + $0x1b8] sm:$0xff]
    %v256 = vld [vmem:[#allocation5 + $0x1c0] sm:$0xff]
    %v257 = vld [vmem:[#allocation5 + $0x1c8] sm:$0xff]
    %v258 = vld [vmem:[#allocation5 + $0x1d0] sm:$0xff]
    %v259 = vld [vmem:[#allocation5 + $0x1d8] sm:$0xff]
    %v260 = vld [vmem:[#allocation5 + $0x1e0] sm:$0xff]
    %v261 = vld [vmem:[#allocation5 + $0x1e8] sm:$0xff]
    %v262 = vld [vmem:[#allocation5 + $0x1f0] sm:$0xff]
    %v263 = vld [vmem:[#allocation5 + $0x1f8] sm:$0xff]
    %v264 = vld [vmem:[#allocation5 + $0x200] sm:$0xff]
    %v265 = vld [vmem:[#allocation5 + $0x208] sm:$0xff]
    %s266 = scalar_lea.vmem [#allocation7], 3
    %v267 = vld [vmem:[%s266] ss:$8 sm:$0x3]
    %s268 = scalar_lea.vmem [#allocation7], 4
    %v269 = vld [vmem:[%s268] ss:$8 sm:$0x3]
    %s270 = scalar_lea.vmem [#allocation7], 5
    %v271 = vld [vmem:[%s270] ss:$8 sm:$0x3]
    %v273 = vlaneseq
    %v274 = vshrl.u32 %v273, 7
    %v275 = vsub.s32 0, %v274
    %v276 = vrot.slane %v267, %v275
    %v277 = vlaneseq
    %v278 = vshrl.u32 %v277, 7
    %v279 = vsub.s32 1, %v278
    %v280 = vrot.slane %v267, %v279
    %283 = vmatprep.subr.mxu0 %v203
    %284 = vmatpush1.msra.mxu0 %v202
    %285 = vmatprep.subr.mxu0 %v205
    %286 = vmatpush1.msra.mxu0 %v204
    %287 = vmatprep.subr.mxu0 %v207
    %288 = vmatpush1.msra.mxu0 %v206
    %289 = vmatprep.subr.mxu0 %v209
    %290 = vmatpush1.msra.mxu0 %v208
    %291 = vmatprep.subr.mxu0 %v211
    %292 = vmatpush1.msra.mxu0 %v210
    %293 = vmatprep.subr.mxu0 %v213
    %294 = vmatpush1.msra.mxu0 %v212
    %295 = vmatprep.subr.mxu0 %v215
    %296 = vmatpush1.msra.mxu0 %v214
    %297 = vmatprep.subr.mxu0 %v217
    %298 = vmatpush1.msra.mxu0 %v216
    %299 = vmatprep.subr.mxu0 %v219
    %300 = vmatpush1.msra.mxu0 %v218
    %301 = vmatprep.subr.mxu0 %v221
    %302 = vmatpush1.msra.mxu0 %v220
    %303 = vmatprep.subr.mxu0 %v223
    %304 = vmatpush1.msra.mxu0 %v222
    %305 = vmatprep.subr.mxu0 %v225
    %306 = vmatpush1.msra.mxu0 %v224
    %307 = vmatprep.subr.mxu0 %v227
    %308 = vmatpush1.msra.mxu0 %v226
    %309 = vmatprep.subr.mxu0 %v229
    %310 = vmatpush1.msra.mxu0 %v228
    %311 = vmatprep.subr.mxu0 %v231
    %312 = vmatpush1.msra.mxu0 %v230
    %313 = vmatprep.subr.mxu0 %v233
    %314 = vmatpush1.msra.mxu0 %v232
    %315 = vmatprep.subr.mxu0 %v235
    %316 = vmatpush1.msra.mxu0 %v234
    %317 = vmatprep.subr.mxu0 %v237
    %318 = vmatpush1.msra.mxu0 %v236
    %319 = vmatprep.subr.mxu0 %v239
    %320 = vmatpush1.msra.mxu0 %v238
    %321 = vmatprep.subr.mxu0 %v241
    %322 = vmatpush1.msra.mxu0 %v240
    %323 = vmatprep.subr.mxu0 %v243
    %324 = vmatpush1.msra.mxu0 %v242
    %325 = vmatprep.subr.mxu0 %v245
    %326 = vmatpush1.msra.mxu0 %v244
    %327 = vmatprep.subr.mxu0 %v247
    %328 = vmatpush1.msra.mxu0 %v246
    %329 = vmatprep.subr.mxu0 %v249
    %330 = vmatpush1.msra.mxu0 %v248
    %331 = vmatprep.subr.mxu0 %v251
    %332 = vmatpush1.msra.mxu0 %v250
    %333 = vmatprep.subr.mxu0 %v253
    %334 = vmatpush1.msra.mxu0 %v252
    %335 = vmatprep.subr.mxu0 %v255
    %336 = vmatpush1.msra.mxu0 %v254
    %337 = vmatprep.subr.mxu0 %v257
    %338 = vmatpush1.msra.mxu0 %v256
    %339 = vmatprep.subr.mxu0 %v259
    %340 = vmatpush1.msra.mxu0 %v258
    %341 = vmatprep.subr.mxu0 %v261
    %342 = vmatpush1.msra.mxu0 %v260
    %343 = vmatprep.subr.mxu0 %v263
    %344 = vmatpush1.msra.mxu0 %v262
    %345 = vmatprep.subr.mxu0 %v265
    %346 = vmatpush1.msra.mxu0 %v264
    %347 = vmatprep.mubr.f32.mxu0 %v201
    %348 = vmatmul.mubr.f32.gmra.mrb[0].mxu0 %v200
    %v349 = vpop.f32.mrb[0].mxu0
    %v350 = vadd.f32 %v276, %v349
    %v351 = vpop.f32.mrb[0].mxu0
    %v352 = vadd.f32 %v280, %v351
    %353 = vdwg.mxu0
    %v354 = vadd.f32 %v350, %v352
    %355 = vadd.xlane.f32.xlu0 %v354
    %v356 = vpop.xlane.xlu0 %355
    %v357 = vmul.f32 %v350, %v350
    %v358 = vmul.f32 %v352, %v352
    %v359 = vadd.f32 %v357, %v358
    %360 = vadd.xlane.f32.xlu0 %v359
    %v361 = vpop.xlane.xlu0 %360
    %v362 = vmul.f32 %v356, 0.00390625
    %v363 = vmul.f32 %v361, 0.00390625
    %v364 = vmul.f32 %v362, %v362
    %v365 = vsub.f32 %v363, %v364
    %v366 = vsub.f32 %v350, %v362
    %v367 = vsub.f32 %v352, %v362
    %v368 = vadd.f32 %v365, 1e-05
    %v369 = vrsqrt.pop %v368
    %v370 = vmul.f32 %v366, %v369
    %v371 = vmul.f32 %v367, %v369
    %v373 = vlaneseq
    %v374 = vshrl.u32 %v373, 7
    %v375 = vsub.s32 0, %v374
    %v376 = vrot.slane %v269, %v375
    %v377 = vlaneseq
    %v378 = vshrl.u32 %v377, 7
    %v379 = vsub.s32 1, %v378
    %v380 = vrot.slane %v269, %v379
    %v383 = vmul.f32 %v370, %v376
    %v384 = vmul.f32 %v371, %v380
    %v386 = vlaneseq
    %v387 = vshrl.u32 %v386, 7
    %v388 = vsub.s32 0, %v387
    %v389 = vrot.slane %v271, %v388
    %v390 = vlaneseq
    %v391 = vshrl.u32 %v390, 7
    %v392 = vsub.s32 1, %v391
    %v393 = vrot.slane %v271, %v392
    %v396 = vadd.f32 %v383, %v389
    %v397 = vadd.f32 %v384, %v393
    %v398 = vmul.f32 %v396, 0.5
    %v399 = vmul.f32 %v397, 0.5
    %v400 = vmul.f32 %v396, 0.70710677
    %v401 = vmul.f32 %v397, 0.70710677
    %v402 = verf.f32.pop %v400
    %v403 = verf.f32.pop %v401
    %v404 = vadd.f32 %v402, 1.0
    %v405 = vadd.f32 %v403, 1.0
    %v406 = vmul.f32 %v398, %v404
    %v407 = vmul.f32 %v399, %v405
    %v408 = vld [vmem:[#allocation5 + $0x210] sm:$0xff]
    %v409 = vld [vmem:[#allocation5 + $0x220] sm:$0xff]
    %v410 = vld [vmem:[#allocation5 + $0x230] sm:$0xff]
    %v411 = vld [vmem:[#allocation5 + $0x240] sm:$0xff]
    %v412 = vld [vmem:[#allocation5 + $0x250] sm:$0xff]
    %v413 = vld [vmem:[#allocation5 + $0x260] sm:$0xff]
    %v414 = vld [vmem:[#allocation5 + $0x270] sm:$0xff]
    %v415 = vld [vmem:[#allocation5 + $0x280] sm:$0xff]
    %v416 = vld [vmem:[#allocation5 + $0x290] sm:$0xff]
    %v417 = vld [vmem:[#allocation5 + $0x2a0] sm:$0xff]
    %v418 = vld [vmem:[#allocation5 + $0x2b0] sm:$0xff]
    %v419 = vld [vmem:[#allocation5 + $0x2c0] sm:$0xff]
    %v420 = vld [vmem:[#allocation5 + $0x2d0] sm:$0xff]
    %v421 = vld [vmem:[#allocation5 + $0x2e0] sm:$0xff]
    %v422 = vld [vmem:[#allocation5 + $0x2f0] sm:$0xff]
    %v423 = vld [vmem:[#allocation5 + $0x300] sm:$0xff]
    %v424 = vld [vmem:[#allocation5 + $0x310] sm:$0xff]
    %v425 = vld [vmem:[#allocation5 + $0x320] sm:$0xff]
    %v426 = vld [vmem:[#allocation5 + $0x330] sm:$0xff]
    %v427 = vld [vmem:[#allocation5 + $0x340] sm:$0xff]
    %v428 = vld [vmem:[#allocation5 + $0x350] sm:$0xff]
    %v429 = vld [vmem:[#allocation5 + $0x360] sm:$0xff]
    %v430 = vld [vmem:[#allocation5 + $0x370] sm:$0xff]
    %v431 = vld [vmem:[#allocation5 + $0x380] sm:$0xff]
    %v432 = vld [vmem:[#allocation5 + $0x390] sm:$0xff]
    %v433 = vld [vmem:[#allocation5 + $0x3a0] sm:$0xff]
    %v434 = vld [vmem:[#allocation5 + $0x3b0] sm:$0xff]
    %v435 = vld [vmem:[#allocation5 + $0x3c0] sm:$0xff]
    %v436 = vld [vmem:[#allocation5 + $0x3d0] sm:$0xff]
    %v437 = vld [vmem:[#allocation5 + $0x3e0] sm:$0xff]
    %v438 = vld [vmem:[#allocation5 + $0x3f0] sm:$0xff]
    %v439 = vld [vmem:[#allocation5 + $0x400] sm:$0xff]
    %v440 = vld [vmem:[#allocation7 + $0x6] ss:$0 sm:$0xff]
    %v441 = vld [vmem:[#allocation7 + $0x7] ss:$0 sm:$0xff]
    %v442 = vld [vmem:[#allocation7 + $0x10] ss:$0 sm:$0xff]
    %443 = vmatprep.subr.mxu0 0.0
    %444 = vmatpush1.msra.mxu0 %v408
    %445 = vmatprep.subr.mxu0 0.0
    %446 = vmatpush1.msra.mxu0 %v409
    %447 = vmatprep.subr.mxu0 0.0
    %448 = vmatpush1.msra.mxu0 %v410
    %449 = vmatprep.subr.mxu0 0.0
    %450 = vmatpush1.msra.mxu0 %v411
    %451 = vmatprep.subr.mxu0 0.0
    %452 = vmatpush1.msra.mxu0 %v412
    %453 = vmatprep.subr.mxu0 0.0
    %454 = vmatpush1.msra.mxu0 %v413
    %455 = vmatprep.subr.mxu0 0.0
    %456 = vmatpush1.msra.mxu0 %v414
    %457 = vmatprep.subr.mxu0 0.0
    %458 = vmatpush1.msra.mxu0 %v415
    %459 = vmatprep.subr.mxu0 0.0
    %460 = vmatpush1.msra.mxu0 %v416
    %461 = vmatprep.subr.mxu0 0.0
    %462 = vmatpush1.msra.mxu0 %v417
    %463 = vmatprep.subr.mxu0 0.0
    %464 = vmatpush1.msra.mxu0 %v418
    %465 = vmatprep.subr.mxu0 0.0
    %466 = vmatpush1.msra.mxu0 %v419
    %467 = vmatprep.subr.mxu0 0.0
    %468 = vmatpush1.msra.mxu0 %v420
    %469 = vmatprep.subr.mxu0 0.0
    %470 = vmatpush1.msra.mxu0 %v421
    %471 = vmatprep.subr.mxu0 0.0
    %472 = vmatpush1.msra.mxu0 %v422
    %473 = vmatprep.subr.mxu0 0.0
    %474 = vmatpush1.msra.mxu0 %v423
    %475 = vmatprep.subr.mxu0 0.0
    %476 = vmatpush1.msra.mxu0 %v424
    %477 = vmatprep.subr.mxu0 0.0
    %478 = vmatpush1.msra.mxu0 %v425
    %479 = vmatprep.subr.mxu0 0.0
    %480 = vmatpush1.msra.mxu0 %v426
    %481 = vmatprep.subr.mxu0 0.0
    %482 = vmatpush1.msra.mxu0 %v427
    %483 = vmatprep.subr.mxu0 0.0
    %484 = vmatpush1.msra.mxu0 %v428
    %485 = vmatprep.subr.mxu0 0.0
    %486 = vmatpush1.msra.mxu0 %v429
    %487 = vmatprep.subr.mxu0 0.0
    %488 = vmatpush1.msra.mxu0 %v430
    %489 = vmatprep.subr.mxu0 0.0
    %490 = vmatpush1.msra.mxu0 %v431
    %491 = vmatprep.subr.mxu0 0.0
    %492 = vmatpush1.msra.mxu0 %v432
    %493 = vmatprep.subr.mxu0 0.0
    %494 = vmatpush1.msra.mxu0 %v433
    %495 = vmatprep.subr.mxu0 0.0
    %496 = vmatpush1.msra.mxu0 %v434
    %497 = vmatprep.subr.mxu0 0.0
    %498 = vmatpush1.msra.mxu0 %v435
    %499 = vmatprep.subr.mxu0 0.0
    %500 = vmatpush1.msra.mxu0 %v436
    %501 = vmatprep.subr.mxu0 0.0
    %502 = vmatpush1.msra.mxu0 %v437
    %503 = vmatprep.subr.mxu0 0.0
    %504 = vmatpush1.msra.mxu0 %v438
    %505 = vmatprep.subr.mxu0 0.0
    %506 = vmatpush1.msra.mxu0 %v439
    %507 = vmatprep.mubr.f32.mxu0 %v407
    %508 = vmatmul.mubr.f32.gmra.mrb[0].mxu0 %v406
    %v509 = vpop.f32.mrb[0].mxu0
    %v510 = vadd.f32 %v440, %v509
    %v511 = vpop.f32.mrb[0].mxu0
    %512 = vdwg.mxu0
    %513 = vadd.xlane.f32.xlu0 %v510
    %v514 = vpop.xlane.xlu0 %513
    %v515 = vmul.f32 %v510, %v510
    %516 = vadd.xlane.f32.xlu0 %v515
    %v517 = vpop.xlane.xlu0 %516
    %v518 = vmul.f32 %v514, 0.0078125
    %v519 = vmul.f32 %v517, 0.0078125
    %v520 = vmul.f32 %v518, %v518
    %v521 = vsub.f32 %v519, %v520
    %v522 = vsub.f32 %v510, %v518
    %v523 = vadd.f32 %v521, 1e-05
    %v524 = vrsqrt.pop %v523
    %v525 = vmul.f32 %v522, %v524
    %v526 = vmul.f32 %v525, %v441
    %v527 = vadd.f32 %v526, %v442
    %v528 = vmul.f32 %v527, 0.5
    %v529 = vmul.f32 %v527, 0.70710677
    %v530 = verf.f32.pop %v529
    %v531 = vadd.f32 %v530, 1.0
    %v532 = vmul.f32 %v528, %v531
    %v533 = vld [vmem:[#allocation5 + $0x410] sm:$0xff]
    %v534 = vld [vmem:[#allocation5 + $0x420] sm:$0xff]
    %v535 = vld [vmem:[#allocation5 + $0x430] sm:$0xff]
    %v536 = vld [vmem:[#allocation5 + $0x440] sm:$0xff]
    %v537 = vld [vmem:[#allocation5 + $0x450] sm:$0xff]
    %v538 = vld [vmem:[#allocation5 + $0x460] sm:$0xff]
    %v539 = vld [vmem:[#allocation5 + $0x470] sm:$0xff]
    %v540 = vld [vmem:[#allocation5 + $0x480] sm:$0xff]
    %v541 = vld [vmem:[#allocation5 + $0x490] sm:$0xff]
    %v542 = vld [vmem:[#allocation5 + $0x4a0] sm:$0xff]
    %v543 = vld [vmem:[#allocation5 + $0x4b0] sm:$0xff]
    %v544 = vld [vmem:[#allocation5 + $0x4c0] sm:$0xff]
    %v545 = vld [vmem:[#allocation5 + $0x4d0] sm:$0xff]
    %v546 = vld [vmem:[#allocation5 + $0x4e0] sm:$0xff]
    %v547 = vld [vmem:[#allocation5 + $0x4f0] sm:$0xff]
    %v548 = vld [vmem:[#allocation5 + $0x500] sm:$0xff]
    %v549 = vld [vmem:[#allocation7 + $0x11] ss:$0 sm:$0xff]
    %v550 = vld [vmem:[#allocation7 + $0x12] ss:$0 sm:$0xff]
    %v551 = vld [vmem:[#allocation7 + $0x13] ss:$0 sm:$0xff]
    %552 = vmatprep.subr.mxu0 0.0
    %553 = vmatpush1.msra.mxu0 %v533
    %554 = vmatprep.subr.mxu0 0.0
    %555 = vmatpush1.msra.mxu0 %v534
    %556 = vmatprep.subr.mxu0 0.0
    %557 = vmatpush1.msra.mxu0 %v535
    %558 = vmatprep.subr.mxu0 0.0
    %559 = vmatpush1.msra.mxu0 %v536
    %560 = vmatprep.subr.mxu0 0.0
    %561 = vmatpush1.msra.mxu0 %v537
    %562 = vmatprep.subr.mxu0 0.0
    %563 = vmatpush1.msra.mxu0 %v538
    %564 = vmatprep.subr.mxu0 0.0
    %565 = vmatpush1.msra.mxu0 %v539
    %566 = vmatprep.subr.mxu0 0.0
    %567 = vmatpush1.msra.mxu0 %v540
    %568 = vmatprep.subr.mxu0 0.0
    %569 = vmatpush1.msra.mxu0 %v541
    %570 = vmatprep.subr.mxu0 0.0
    %571 = vmatpush1.msra.mxu0 %v542
    %572 = vmatprep.subr.mxu0 0.0
    %573 = vmatpush1.msra.mxu0 %v543
    %574 = vmatprep.subr.mxu0 0.0
    %575 = vmatpush1.msra.mxu0 %v544
    %576 = vmatprep.subr.mxu0 0.0
    %577 = vmatpush1.msra.mxu0 %v545
    %578 = vmatprep.subr.mxu0 0.0
    %579 = vmatpush1.msra.mxu0 %v546
    %580 = vmatprep.subr.mxu0 0.0
    %581 = vmatpush1.msra.mxu0 %v547
    %582 = vmatprep.subr.mxu0 0.0
    %583 = vmatpush1.msra.mxu0 %v548
    %584 = vmatprep.subr.mxu0 0.0
    %585 = vmatpush1.msra.mxu0 0.0
    %586 = vmatprep.subr.mxu0 0.0
    %587 = vmatpush1.msra.mxu0 0.0
    %588 = vmatprep.subr.mxu0 0.0
    %589 = vmatpush1.msra.mxu0 0.0
    %590 = vmatprep.subr.mxu0 0.0
    %591 = vmatpush1.msra.mxu0 0.0
    %592 = vmatprep.subr.mxu0 0.0
    %593 = vmatpush1.msra.mxu0 0.0
    %594 = vmatprep.subr.mxu0 0.0
    %595 = vmatpush1.msra.mxu0 0.0
    %596 = vmatprep.subr.mxu0 0.0
    %597 = vmatpush1.msra.mxu0 0.0
    %598 = vmatprep.subr.mxu0 0.0
    %599 = vmatpush1.msra.mxu0 0.0
    %600 = vmatprep.subr.mxu0 0.0
    %601 = vmatpush1.msra.mxu0 0.0
    %602 = vmatprep.subr.mxu0 0.0
    %603 = vmatpush1.msra.mxu0 0.0
    %604 = vmatprep.subr.mxu0 0.0
    %605 = vmatpush1.msra.mxu0 0.0
    %606 = vmatprep.subr.mxu0 0.0
    %607 = vmatpush1.msra.mxu0 0.0
    %608 = vmatprep.subr.mxu0 0.0
    %609 = vmatpush1.msra.mxu0 0.0
    %610 = vmatprep.subr.mxu0 0.0
    %611 = vmatpush1.msra.mxu0 0.0
    %612 = vmatprep.subr.mxu0 0.0
    %613 = vmatpush1.msra.mxu0 0.0
    %614 = vmatprep.subr.mxu0 0.0
    %615 = vmatpush1.msra.mxu0 0.0
    %616 = vmatprep.mubr.f32.mxu0 0.0
    %617 = vmatmul.mubr.f32.gmra.mrb[0].mxu0 %v532
    %v618 = vpop.f32.mrb[0].mxu0
    %v619 = vadd.f32 %v549, %v618
    %v620 = vpop.f32.mrb[0].mxu0
    %621 = vdwg.mxu0
    %622 = vadd.xlane.f32.xlu0 %v619
    %v623 = vpop.xlane.xlu0 %622
    %v624 = vmul.f32 %v619, %v619
    %625 = vadd.xlane.f32.xlu0 %v624
    %v626 = vpop.xlane.xlu0 %625
    %v627 = vmul.f32 %v623, 0.015625
    %v628 = vmul.f32 %v626, 0.015625
    %v629 = vmul.f32 %v627, %v627
    %v630 = vsub.f32 %v628, %v629
    %v631 = vsub.f32 %v619, %v627
    %v632 = vadd.f32 %v630, 1e-05
    %v633 = vrsqrt.pop %v632
    %v634 = vmul.f32 %v631, %v633
    %v635 = vmul.f32 %v634, %v550
    %v636 = vadd.f32 %v635, %v551
    %v637 = vmul.f32 %v636, 0.5
    %v638 = vmul.f32 %v636, 0.70710677
    %v639 = verf.f32.pop %v638
    %v640 = vadd.f32 %v639, 1.0
    %v641 = vmul.f32 %v637, %v640
    %v642 = vld [vmem:[#allocation5 + $0x510] sm:$0xff]
    %v643 = vld [vmem:[#allocation5 + $0x520] sm:$0xff]
    %v644 = vld [vmem:[#allocation5 + $0x530] sm:$0xff]
    %v645 = vld [vmem:[#allocation5 + $0x540] sm:$0xff]
    %v646 = vld [vmem:[#allocation5 + $0x550] sm:$0xff]
    %v647 = vld [vmem:[#allocation5 + $0x560] sm:$0xff]
    %v648 = vld [vmem:[#allocation5 + $0x570] sm:$0xff]
    %v649 = vld [vmem:[#allocation5 + $0x580] sm:$0xff]
    %v650 = vld [vmem:[#allocation5 + $0x590] sm:$0xff]
    %v651 = vld [vmem:[#allocation5 + $0x5a0] sm:$0xff]
    %v652 = vld [vmem:[#allocation5 + $0x5b0] sm:$0xff]
    %v653 = vld [vmem:[#allocation5 + $0x5c0] sm:$0xff]
    %v654 = vld [vmem:[#allocation5 + $0x5d0] sm:$0xff]
    %v655 = vld [vmem:[#allocation5 + $0x5e0] sm:$0xff]
    %v656 = vld [vmem:[#allocation5 + $0x5f0] sm:$0xff]
    %v657 = vld [vmem:[#allocation5 + $0x600] sm:$0xff]
    %v658 = vld [vmem:[#allocation7 + $0x14] ss:$0 sm:$0xff]
    %v659 = vld [vmem:[#allocation7 + $0x15] ss:$0 sm:$0xff]
    %v660 = vld [vmem:[#allocation7 + $0x16] ss:$0 sm:$0xff]
    %661 = vmatprep.subr.mxu0 0.0
    %662 = vmatpush1.msra.mxu0 %v642
    %663 = vmatprep.subr.mxu0 0.0
    %664 = vmatpush1.msra.mxu0 %v643
    %665 = vmatprep.subr.mxu0 0.0
    %666 = vmatpush1.msra.mxu0 %v644
    %667 = vmatprep.subr.mxu0 0.0
    %668 = vmatpush1.msra.mxu0 %v645
    %669 = vmatprep.subr.mxu0 0.0
    %670 = vmatpush1.msra.mxu0 %v646
    %671 = vmatprep.subr.mxu0 0.0
    %672 = vmatpush1.msra.mxu0 %v647
    %673 = vmatprep.subr.mxu0 0.0
    %674 = vmatpush1.msra.mxu0 %v648
    %675 = vmatprep.subr.mxu0 0.0
    %676 = vmatpush1.msra.mxu0 %v649
    %677 = vmatprep.subr.mxu0 0.0
    %678 = vmatpush1.msra.mxu0 %v650
    %679 = vmatprep.subr.mxu0 0.0
    %680 = vmatpush1.msra.mxu0 %v651
    %681 = vmatprep.subr.mxu0 0.0
    %682 = vmatpush1.msra.mxu0 %v652
    %683 = vmatprep.subr.mxu0 0.0
    %684 = vmatpush1.msra.mxu0 %v653
    %685 = vmatprep.subr.mxu0 0.0
    %686 = vmatpush1.msra.mxu0 %v654
    %687 = vmatprep.subr.mxu0 0.0
    %688 = vmatpush1.msra.mxu0 %v655
    %689 = vmatprep.subr.mxu0 0.0
    %690 = vmatpush1.msra.mxu0 %v656
    %691 = vmatprep.subr.mxu0 0.0
    %692 = vmatpush1.msra.mxu0 %v657
    %693 = vmatprep.subr.mxu0 0.0
    %694 = vmatpush1.msra.mxu0 0.0
    %695 = vmatprep.subr.mxu0 0.0
    %696 = vmatpush1.msra.mxu0 0.0
    %697 = vmatprep.subr.mxu0 0.0
    %698 = vmatpush1.msra.mxu0 0.0
    %699 = vmatprep.subr.mxu0 0.0
    %700 = vmatpush1.msra.mxu0 0.0
    %701 = vmatprep.subr.mxu0 0.0
    %702 = vmatpush1.msra.mxu0 0.0
    %703 = vmatprep.subr.mxu0 0.0
    %704 = vmatpush1.msra.mxu0 0.0
    %705 = vmatprep.subr.mxu0 0.0
    %706 = vmatpush1.msra.mxu0 0.0
    %707 = vmatprep.subr.mxu0 0.0
    %708 = vmatpush1.msra.mxu0 0.0
    %709 = vmatprep.subr.mxu0 0.0
    %710 = vmatpush1.msra.mxu0 0.0
    %711 = vmatprep.subr.mxu0 0.0
    %712 = vmatpush1.msra.mxu0 0.0
    %713 = vmatprep.subr.mxu0 0.0
    %714 = vmatpush1.msra.mxu0 0.0
    %715 = vmatprep.subr.mxu0 0.0
    %716 = vmatpush1.msra.mxu0 0.0
    %717 = vmatprep.subr.mxu0 0.0
    %718 = vmatpush1.msra.mxu0 0.0
    %719 = vmatprep.subr.mxu0 0.0
    %720 = vmatpush1.msra.mxu0 0.0
    %721 = vmatprep.subr.mxu0 0.0
    %722 = vmatpush1.msra.mxu0 0.0
    %723 = vmatprep.subr.mxu0 0.0
    %724 = vmatpush1.msra.mxu0 0.0
    %725 = vmatprep.mubr.f32.mxu0 0.0
    %726 = vmatmul.mubr.f32.gmra.mrb[0].mxu0 %v641
    %v727 = vpop.f32.mrb[0].mxu0
    %v728 = vadd.f32 %v658, %v727
    %v729 = vpop.f32.mrb[0].mxu0
    %730 = vdwg.mxu0
    %731 = vadd.xlane.f32.xlu0 %v728
    %v732 = vpop.xlane.xlu0 %731
    %v733 = vmul.f32 %v728, %v728
    %734 = vadd.xlane.f32.xlu0 %v733
    %v735 = vpop.xlane.xlu0 %734
    %v736 = vmul.f32 %v732, 0.015625
    %v737 = vmul.f32 %v735, 0.015625
    %v738 = vmul.f32 %v736, %v736
    %v739 = vsub.f32 %v737, %v738
    %v740 = vsub.f32 %v728, %v736
    %v741 = vadd.f32 %v739, 1e-05
    %v742 = vrsqrt.pop %v741
    %v743 = vmul.f32 %v740, %v742
    %v744 = vmul.f32 %v743, %v659
    %v745 = vadd.f32 %v744, %v660
    %v746 = vmul.f32 %v745, 0.5
    %v747 = vmul.f32 %v745, 0.70710677
    %v748 = verf.f32.pop %v747
    %v749 = vadd.f32 %v748, 1.0
    %v750 = vmul.f32 %v746, %v749
    %v751 = vld [vmem:[#allocation5 + $0x610] sm:$0xff]
    %v752 = vld [vmem:[#allocation5 + $0x620] sm:$0xff]
    %v753 = vld [vmem:[#allocation5 + $0x630] sm:$0xff]
    %v754 = vld [vmem:[#allocation5 + $0x640] sm:$0xff]
    %v755 = vld [vmem:[#allocation5 + $0x650] sm:$0xff]
    %v756 = vld [vmem:[#allocation5 + $0x660] sm:$0xff]
    %v757 = vld [vmem:[#allocation5 + $0x670] sm:$0xff]
    %v758 = vld [vmem:[#allocation5 + $0x680] sm:$0xff]
    %v759 = vld [vmem:[#allocation5 + $0x690] sm:$0xff]
    %v760 = vld [vmem:[#allocation5 + $0x6a0] sm:$0xff]
    %v761 = vld [vmem:[#allocation5 + $0x6b0] sm:$0xff]
    %v762 = vld [vmem:[#allocation5 + $0x6c0] sm:$0xff]
    %v763 = vld [vmem:[#allocation5 + $0x6d0] sm:$0xff]
    %v764 = vld [vmem:[#allocation5 + $0x6e0] sm:$0xff]
    %v765 = vld [vmem:[#allocation5 + $0x6f0] sm:$0xff]
    %v766 = vld [vmem:[#allocation5 + $0x700] sm:$0xff]
    %v767 = vld [vmem:[#allocation7 + $0x17] ss:$0 sm:$0xff]
    %768 = vmatprep.subr.mxu0 0.0
    %769 = vmatpush1.msra.mxu0 %v751
    %770 = vmatprep.subr.mxu0 0.0
    %771 = vmatpush1.msra.mxu0 %v752
    %772 = vmatprep.subr.mxu0 0.0
    %773 = vmatpush1.msra.mxu0 %v753
    %774 = vmatprep.subr.mxu0 0.0
    %775 = vmatpush1.msra.mxu0 %v754
    %776 = vmatprep.subr.mxu0 0.0
    %777 = vmatpush1.msra.mxu0 %v755
    %778 = vmatprep.subr.mxu0 0.0
    %779 = vmatpush1.msra.mxu0 %v756
    %780 = vmatprep.subr.mxu0 0.0
    %781 = vmatpush1.msra.mxu0 %v757
    %782 = vmatprep.subr.mxu0 0.0
    %783 = vmatpush1.msra.mxu0 %v758
    %784 = vmatprep.subr.mxu0 0.0
    %785 = vmatpush1.msra.mxu0 %v759
    %786 = vmatprep.subr.mxu0 0.0
    %787 = vmatpush1.msra.mxu0 %v760
    %788 = vmatprep.subr.mxu0 0.0
    %789 = vmatpush1.msra.mxu0 %v761
    %790 = vmatprep.subr.mxu0 0.0
    %791 = vmatpush1.msra.mxu0 %v762
    %792 = vmatprep.subr.mxu0 0.0
    %793 = vmatpush1.msra.mxu0 %v763
    %794 = vmatprep.subr.mxu0 0.0
    %795 = vmatpush1.msra.mxu0 %v764
    %796 = vmatprep.subr.mxu0 0.0
    %797 = vmatpush1.msra.mxu0 %v765
    %798 = vmatprep.subr.mxu0 0.0
    %799 = vmatpush1.msra.mxu0 %v766
    %800 = vmatprep.subr.mxu0 0.0
    %801 = vmatpush1.msra.mxu0 0.0
    %802 = vmatprep.subr.mxu0 0.0
    %803 = vmatpush1.msra.mxu0 0.0
    %804 = vmatprep.subr.mxu0 0.0
    %805 = vmatpush1.msra.mxu0 0.0
    %806 = vmatprep.subr.mxu0 0.0
    %807 = vmatpush1.msra.mxu0 0.0
    %808 = vmatprep.subr.mxu0 0.0
    %809 = vmatpush1.msra.mxu0 0.0
    %810 = vmatprep.subr.mxu0 0.0
    %811 = vmatpush1.msra.mxu0 0.0
    %812 = vmatprep.subr.mxu0 0.0
    %813 = vmatpush1.msra.mxu0 0.0
    %814 = vmatprep.subr.mxu0 0.0
    %815 = vmatpush1.msra.mxu0 0.0
    %816 = vmatprep.subr.mxu0 0.0
    %817 = vmatpush1.msra.mxu0 0.0
    %818 = vmatprep.subr.mxu0 0.0
    %819 = vmatpush1.msra.mxu0 0.0
    %820 = vmatprep.subr.mxu0 0.0
    %821 = vmatpush1.msra.mxu0 0.0
    %822 = vmatprep.subr.mxu0 0.0
    %823 = vmatpush1.msra.mxu0 0.0
    %824 = vmatprep.subr.mxu0 0.0
    %825 = vmatpush1.msra.mxu0 0.0
    %826 = vmatprep.subr.mxu0 0.0
    %827 = vmatpush1.msra.mxu0 0.0
    %828 = vmatprep.subr.mxu0 0.0
    %829 = vmatpush1.msra.mxu0 0.0
    %830 = vmatprep.subr.mxu0 0.0
    %831 = vmatpush1.msra.mxu0 0.0
    %832 = vmatprep.mubr.f32.mxu0 0.0
    %833 = vmatmul.mubr.f32.gmra.mrb[0].mxu0 %v750
    %v834 = vpop.f32.mrb[0].mxu0
    %v835 = vadd.f32 %v767, %v834
    %v836 = vpop.f32.mrb[0].mxu0
    %837 = vdwg.mxu0
    %v838 = vxor.u32 %v835, 2147483648
    %v839 = vmul.f32 %v838, 1.442695
    %v840 = vpow.pop %v839
    %v841 = vadd.f32 %v840, 1.0
    %v842 = vrcp.pop %v841
    %v843 = vmul.f32 1.0, %v842
    %844 = vst [vmem:[#allocation8] sm:$0xff] %v843
    // Predicated region
    $region26: #{tpu_custom_call.1} parent=1 // pred_check
      _
    $region27: #{tpu_custom_call.1} parent=1 // pred_check_branch
      %846 = sbr.rel (0) target = $region29
    $region28: #{tpu_custom_call.1} parent=1 // pred_region
      %s848 = ssub.s32 128, 128
      %849 = vsyncadd [#allocation4], %s848
      %s851 = sshll.u32 [#allocation8], 4
      %s852 = int_to_ptr.vmem [resolvable:$true] %s851
      %854 = dma.vmem_to_hbm [thread:$0]  %s852, 128, %s3, [#allocation4]
    $region29: #{tpu_custom_call.1} parent=1 // pred_fallthru
      _
    // Predicated region
    $region30: #{tpu_custom_call.1} parent=1 // pred_check
      _
    $region31: #{tpu_custom_call.1} parent=1 // pred_check_branch
      %856 = sbr.rel (0) target = $region33
    $region32: #{tpu_custom_call.1} parent=1 // pred_region
      %857 = dma.done [#allocation4], 128
    $region33: #{tpu_custom_call.1} parent=1 // pred_fallthru
      _
    %858 = vsyncpa [#allocation3], 1
    %859 = vsyncpa [#allocation6], 1
    %860 = vsyncpa [#allocation4], 1

</llo_original>
